<compile_context>
chip_gen: v7x
topology: tpu7x:2x2x1
jax: 0.10.0
libtpu: 0.0.40
codegen_flags: <defaults>
</compile_context>

<pallas_src>
import math

import jax
import jax.numpy as jnp
from jax.experimental import pallas as pl
from jax.experimental.pallas import tpu as pltpu


# ----------------------------------------------------------------------------
# Kernel factory (layer counts / flags are trace-time static)
# ----------------------------------------------------------------------------
def _make_denoise_kernel(n_in_layers, n_out_layers, norm, mess_dropout,
                         compute_dtype):
    """Ref ordering:
      x, t, freqs, [dropout mask], wec, wes, be, w0x, w0e, b0,
      (WiT, bi) for remaining in_layers, (WoT, bo) for out_layers, out_ref
    """

    def kernel(*refs):
        idx = 0
        x_ref = refs[idx]; idx += 1
        t_ref = refs[idx]; idx += 1
        f_ref = refs[idx]; idx += 1
        if mess_dropout:
            mask_ref = refs[idx]; idx += 1
        wec_ref = refs[idx]; idx += 1
        wes_ref = refs[idx]; idx += 1
        be_ref = refs[idx]; idx += 1
        w0x_ref = refs[idx]; idx += 1
        w0e_ref = refs[idx]; idx += 1
        b0_ref = refs[idx]; idx += 1
        in_refs = []
        for _ in range(n_in_layers - 1):
            in_refs.append((refs[idx], refs[idx + 1])); idx += 2
        out_layer_refs = []
        for _ in range(n_out_layers):
            out_layer_refs.append((refs[idx], refs[idx + 1])); idx += 2
        o_ref = refs[idx]

        # --- sinusoidal time embedding + emb_layer (concat-free, pre-split W)
        temp = t_ref[...] * f_ref[...]                       # (TB, half)
        c = jnp.cos(temp).astype(compute_dtype)
        s = jnp.sin(temp).astype(compute_dtype)
        emb = (jnp.dot(c, wec_ref[...], preferred_element_type=jnp.float32)
               + jnp.dot(s, wes_ref[...], preferred_element_type=jnp.float32)
               + be_ref[...])                                # (TB, emb) f32

        x = x_ref[...].astype(jnp.float32)
        if norm:
            # F.normalize(x): x / max(||x||, 1e-12) == x * rsqrt(max(ss, 1e-24))
            ss = jnp.sum(x * x, axis=-1, keepdims=True)
            x = x * jax.lax.rsqrt(jnp.maximum(ss, 1e-24))

        if mess_dropout:
            # mask is precomputed outside (0 or 1/(1-p)); elementwise apply here.
            x = x * mask_ref[...]

        # --- first in_layer on [x, emb] (concat-free), then tanh
        h = (jnp.dot(x.astype(compute_dtype), w0x_ref[...],
                     preferred_element_type=jnp.float32)
             + jnp.dot(emb.astype(compute_dtype), w0e_ref[...],
                       preferred_element_type=jnp.float32)
             + b0_ref[...])
        h = jnp.tanh(h)

        for w_ref, b_ref in in_refs:
            h = jnp.tanh(
                jnp.dot(h.astype(compute_dtype), w_ref[...],
                        preferred_element_type=jnp.float32) + b_ref[...])

        for i, (w_ref, b_ref) in enumerate(out_layer_refs):
            h = jnp.dot(h.astype(compute_dtype), w_ref[...],
                        preferred_element_type=jnp.float32) + b_ref[...]
            if i != n_out_layers - 1:
                h = jnp.tanh(h)

        o_ref[...] = h.astype(o_ref.dtype)

    return kernel


# ----------------------------------------------------------------------------
# Parameter init (deterministic, mirrors Denoise.init_weights shapes/stds)
# ----------------------------------------------------------------------------
def _init_linear(key, d_in, d_out):
    kw, kb = jax.random.split(key)
    std = math.sqrt(2.0 / (d_out + d_in))                 # np.sqrt(2/(size0+size1))
    w = std * jax.random.normal(kw, (d_out, d_in), dtype=jnp.float32)  # torch (out,in)
    b = 0.001 * jax.random.normal(kb, (d_out,), dtype=jnp.float32)
    return w, b


def init_denoise_params(key, in_dims, out_dims, emb_size):
    in_dims_temp = [in_dims[0] + emb_size] + list(in_dims[1:])
    out_dims_temp = list(out_dims)
    n_keys = 1 + (len(in_dims_temp) - 1) + (len(out_dims_temp) - 1)
    keys = list(jax.random.split(key, n_keys))
    ki = iter(keys)
    emb_w, emb_b = _init_linear(next(ki), emb_size, emb_size)
    in_layers = [_init_linear(next(ki), d_in, d_out)
                 for d_in, d_out in zip(in_dims_temp[:-1], in_dims_temp[1:])]
    out_layers = [_init_linear(next(ki), d_in, d_out)
                  for d_in, d_out in zip(out_dims_temp[:-1], out_dims_temp[1:])]
    return {"emb_w": emb_w, "emb_b": emb_b,
            "in_layers": in_layers, "out_layers": out_layers}


# ----------------------------------------------------------------------------
# One-time prep: transpose to (in,out), split the concat weights, pad the
# last layer to a lane-dense (multiple-of-128) output width.
# ----------------------------------------------------------------------------
def prepare_kernel_params(params, in_dims, *, compute_dtype=jnp.float32, lane=128):
    emb_w = params["emb_w"]
    emb_size = emb_w.shape[0]
    half = emb_size // 2
    WembT = emb_w.T.astype(compute_dtype)                 # (time_emb_dim, emb)
    wec = WembT[:half]                                    # multiplies cos(temp)
    wes = WembT[half:2 * half]                            # multiplies sin(temp)
    # (if emb_size is odd, the column multiplying the zero pad is dropped: equiv.)
    be = params["emb_b"].reshape(1, -1).astype(jnp.float32)

    in0 = in_dims[0]
    in_layers = params["in_layers"]
    out_layers = params["out_layers"]
    assert len(in_layers) >= 1 and len(out_layers) >= 1

    w0, b0 = in_layers[0]
    W0T = w0.T.astype(compute_dtype)                      # (in0 + emb, d1)
    w0x = W0T[:in0]
    w0e = W0T[in0:]
    b0 = b0.reshape(1, -1).astype(jnp.float32)

    in_rest = [(w.T.astype(compute_dtype), b.reshape(1, -1).astype(jnp.float32))
               for (w, b) in in_layers[1:]]
    outs = [(w.T.astype(compute_dtype), b.reshape(1, -1).astype(jnp.float32))
            for (w, b) in out_layers]

    # lane-dense output: pad the final layer's output dim up to a multiple of 128
    w_last, b_last = outs[-1]
    out_dim = w_last.shape[1]
    out_pad = max(lane, ((out_dim + lane - 1) // lane) * lane)
    if out_pad != out_dim:
        w_last = jnp.pad(w_last, ((0, 0), (0, out_pad - out_dim)))
        b_last = jnp.pad(b_last, ((0, 0), (0, out_pad - out_dim)))
        outs[-1] = (w_last, b_last)

    return {"wec": wec, "wes": wes, "be": be,
            "w0x": w0x, "w0e": w0e, "b0": b0,
            "in_rest": in_rest, "out_layers": outs,
            "emb_size": emb_size, "half": half,
            "out_dim": out_dim, "out_pad": out_pad,
            "compute_dtype": compute_dtype}


# ----------------------------------------------------------------------------
# Forward wrapper: batch grid + weight-resident BlockSpecs + pallas_call
# ----------------------------------------------------------------------------
def denoise_forward(kp, x, timesteps, *, norm=False, mess_dropout=True,
                    dropout_p=0.5, dropout_key=None, batch_tile=512):
    assert batch_tile % 8 == 0, "batch tile must be sublane-aligned (multiple of 8)"
    x = x.astype(jnp.float32)
    B, in0 = x.shape
    half = kp["half"]
    out_dim, out_pad = kp["out_dim"], kp["out_pad"]
    compute_dtype = kp["compute_dtype"]

    freqs = jnp.exp(-math.log(10000.0)
                    * jnp.arange(half, dtype=jnp.float32) / half).reshape(1, half)
    t = timesteps.astype(jnp.float32).reshape(B, 1)

    TB = B if B <= batch_tile else batch_tile
    grid = (pl.cdiv(B, TB),)

    def tile_spec(feat):
        return pl.BlockSpec((TB, feat), lambda i: (i, 0))

    def const_spec(a):
        return pl.BlockSpec(a.shape, lambda i: (0, 0))

    args = [x, t, freqs]
    in_specs = [tile_spec(in0), tile_spec(1), const_spec(freqs)]

    if mess_dropout:
        # TODO(synk): RNG stream differs from torch.nn.Dropout (semantics match:
        # zero w.p. p, scale kept elements by 1/(1-p)).
        if dropout_key is None:
            dropout_key = jax.random.PRNGKey(0)
        keep = jax.random.bernoulli(dropout_key, 1.0 - dropout_p, (B, in0))
        mask = keep.astype(jnp.float32) * (1.0 / (1.0 - dropout_p))
        args.append(mask)
        in_specs.append(tile_spec(in0))

    weight_args = [kp["wec"], kp["wes"], kp["be"], kp["w0x"], kp["w0e"], kp["b0"]]
    for w, b in kp["in_rest"]:
        weight_args += [w, b]
    for w, b in kp["out_layers"]:
        weight_args += [w, b]
    for a in weight_args:
        args.append(a)
        in_specs.append(const_spec(a))

    n_in_layers = 1 + len(kp["in_rest"])
    n_out_layers = len(kp["out_layers"])
    kernel = _make_denoise_kernel(n_in_layers, n_out_layers, norm, mess_dropout,
                                  compute_dtype)

    # ---- advisory cost estimate -------------------------------------------
    flops = 2 * B * (kp["wec"].size + kp["wes"].size
                     + kp["w0x"].size + kp["w0e"].size)
    for w, _ in kp["in_rest"] + kp["out_layers"]:
        flops += 2 * B * w.size
    transc = B * 2 * half + B * kp["w0x"].shape[1]
    for w, _ in kp["in_rest"]:
        transc += B * w.shape[1]
    for w, _ in kp["out_layers"][:-1]:
        transc += B * w.shape[1]
    bytes_accessed = sum(int(a.size * a.dtype.itemsize) for a in args) \
        + B * out_pad * 4
    cost = pl.CostEstimate(flops=int(flops), transcendentals=int(transc),
                           bytes_accessed=int(bytes_accessed))

    # ---- VMEM budget: resident weights + double-buffered tile I/O + acts ---
    weight_bytes = sum(int(a.size * a.dtype.itemsize) for a in weight_args)
    feats = [in0 + kp["emb_size"], out_pad, kp["w0x"].shape[1]]
    feats += [w.shape[1] for w, _ in kp["in_rest"] + kp["out_layers"]]
    max_feat = max(feats)
    tile_io = TB * (in0 + 1 + (in0 if mess_dropout else 0) + out_pad) * 4
    vmem_est = weight_bytes + 4 * tile_io + 8 * TB * max_feat * 4 + (4 << 20)
    vmem_limit = int(min(max(vmem_est, 32 << 20), 64 << 20))

    out = pl.pallas_call(
        kernel,
        out_shape=jax.ShapeDtypeStruct((B, out_pad), jnp.float32),
        grid=grid,
        in_specs=in_specs,
        out_specs=pl.BlockSpec((TB, out_pad), lambda i: (i, 0)),
        compiler_params=pltpu.CompilerParams(
            dimension_semantics=("parallel",),
            vmem_limit_bytes=vmem_limit),
        cost_estimate=cost,
    )(*args)
    return out[:, :out_dim]


# ----------------------------------------------------------------------------
# Pure-JAX reference (matches the torch forward with mess_dropout=False)
# ----------------------------------------------------------------------------
def denoise_ref(params, x, timesteps, norm=False):
    emb_size = params["emb_w"].shape[0]
    half = emb_size // 2
    freqs = jnp.exp(-math.log(10000.0) * jnp.arange(half, dtype=jnp.float32) / half)
    temp = timesteps.astype(jnp.float32)[:, None] * freqs[None]
    time_emb = jnp.concatenate([jnp.cos(temp), jnp.sin(temp)], axis=-1)
    if emb_size % 2:
        time_emb = jnp.concatenate([time_emb, jnp.zeros_like(time_emb[:, :1])], axis=-1)
    emb = time_emb @ params["emb_w"].T + params["emb_b"]
    if norm:
        x = x / jnp.maximum(jnp.linalg.norm(x, axis=-1, keepdims=True), 1e-12)
    h = jnp.concatenate([x, emb], axis=-1)
    for w, b in params["in_layers"]:
        h = jnp.tanh(h @ w.T + b)
    n_out = len(params["out_layers"])
    for i, (w, b) in enumerate(params["out_layers"]):
        h = h @ w.T + b
        if i != n_out - 1:
            h = jnp.tanh(h)
    return h


if __name__ == "__main__":
    in_dims = [16, 32]
    out_dims = [32, 16]
    emb_size = 8
    B = 4

    key = jax.random.PRNGKey(0)
    kp_key, kx, kt, kx2, kt2, kdrop = jax.random.split(key, 6)
    params = init_denoise_params(kp_key, in_dims, out_dims, emb_size)
    kparams = prepare_kernel_params(params, in_dims)   # one-time transpose/split/pad

    x = jax.random.normal(kx, (B, in_dims[0]), dtype=jnp.float32)
    timesteps = jax.random.randint(kt, (B,), 0, 1000)

    # Deterministic path (no dropout) — check against the pure-JAX reference.
    out = jax.block_until_ready(
        denoise_forward(kparams, x, timesteps, norm=False, mess_dropout=False))
    ref = denoise_ref(params, x, timesteps, norm=False)
    assert out.shape == (B, out_dims[-1])
    assert jnp.allclose(out, ref, atol=1e-4, rtol=1e-4), (out, ref)

    # Norm path.
    out_n = jax.block_until_ready(
        denoise_forward(kparams, x, timesteps, norm=True, mess_dropout=False))
    ref_n = denoise_ref(params, x, timesteps, norm=True)
    assert jnp.allclose(out_n, ref_n, atol=1e-4, rtol=1e-4), (out_n, ref_n)

    # Larger batch to exercise the batch grid / pipelining (TB=16 -> 4 tiles).
    B2 = 64
    x2 = jax.random.normal(kx2, (B2, in_dims[0]), dtype=jnp.float32)
    t2 = jax.random.randint(kt2, (B2,), 0, 1000)
    out2 = jax.block_until_ready(
        denoise_forward(kparams, x2, t2, norm=False, mess_dropout=False,
                        batch_tile=16))
    ref2 = denoise_ref(params, x2, t2, norm=False)
    assert out2.shape == (B2, out_dims[-1])
    assert jnp.allclose(out2, ref2, atol=1e-4, rtol=1e-4)

    # Dropout path (torch default mess_dropout=True): mask precomputed outside,
    # applied inside the kernel (zero w.p. p, kept elements scaled 1/(1-p)).
    out_drop = jax.block_until_ready(
        denoise_forward(kparams, x, timesteps, norm=False, mess_dropout=True,
                        dropout_p=0.5, dropout_key=kdrop))
    assert out_drop.shape == (B, out_dims[-1])
    assert bool(jnp.all(jnp.isfinite(out_drop)))

    print("KERNEL_OK")
</pallas_src>

<mosaic_0001>
module attributes {stable_mosaic.version = 11 : i64} {
  func.func @kernel(%arg0: i32, %arg1: memref<4x16xf32, #tpu.memory_space<vmem>>, %arg2: memref<4x1xf32, #tpu.memory_space<vmem>>, %arg3: memref<1x4xf32, #tpu.memory_space<vmem>>, %arg4: memref<4x8xf32, #tpu.memory_space<vmem>>, %arg5: memref<4x8xf32, #tpu.memory_space<vmem>>, %arg6: memref<1x8xf32, #tpu.memory_space<vmem>>, %arg7: memref<16x32xf32, #tpu.memory_space<vmem>>, %arg8: memref<8x32xf32, #tpu.memory_space<vmem>>, %arg9: memref<1x32xf32, #tpu.memory_space<vmem>>, %arg10: memref<32x128xf32, #tpu.memory_space<vmem>>, %arg11: memref<1x128xf32, #tpu.memory_space<vmem>>, %arg12: memref<4x128xf32, #tpu.memory_space<vmem>>) attributes {dimension_semantics = [#tpu.dimension_semantics<parallel>], iteration_bounds = array<i64: 1>, scalar_prefetch = 0 : i64, scratch_operands = 0 : i64, tpu.core_type = #tpu.core_type<tc>, window_params = [{transform_indices = @transform_0, window_bounds = array<i64: 4, 16>}, {transform_indices = @transform_1, window_bounds = array<i64: 4, 1>}, {pipeline_mode = #tpu.pipeline_mode<synchronous>, transform_indices = @transform_2, window_bounds = array<i64: 1, 4>}, {pipeline_mode = #tpu.pipeline_mode<synchronous>, transform_indices = @transform_3, window_bounds = array<i64: 4, 8>}, {pipeline_mode = #tpu.pipeline_mode<synchronous>, transform_indices = @transform_4, window_bounds = array<i64: 4, 8>}, {pipeline_mode = #tpu.pipeline_mode<synchronous>, transform_indices = @transform_5, window_bounds = array<i64: 1, 8>}, {pipeline_mode = #tpu.pipeline_mode<synchronous>, transform_indices = @transform_6, window_bounds = array<i64: 16, 32>}, {pipeline_mode = #tpu.pipeline_mode<synchronous>, transform_indices = @transform_7, window_bounds = array<i64: 8, 32>}, {pipeline_mode = #tpu.pipeline_mode<synchronous>, transform_indices = @transform_8, window_bounds = array<i64: 1, 32>}, {pipeline_mode = #tpu.pipeline_mode<synchronous>, transform_indices = @transform_9, window_bounds = array<i64: 32, 128>}, {pipeline_mode = #tpu.pipeline_mode<synchronous>, transform_indices = @transform_10, window_bounds = array<i64: 1, 128>}, {transform_indices = @transform_11, window_bounds = array<i64: 4, 128>}]} {
    %c0 = arith.constant 0 : index
    %c0_0 = arith.constant 0 : index
    %0 = vector.load %arg2[%c0, %c0_0] : memref<4x1xf32, #tpu.memory_space<vmem>>, vector<4x1xf32>
    %c0_1 = arith.constant 0 : index
    %c0_2 = arith.constant 0 : index
    %1 = vector.load %arg3[%c0_1, %c0_2] : memref<1x4xf32, #tpu.memory_space<vmem>>, vector<1x4xf32>
    %2 = vector.broadcast %0 : vector<4x1xf32> to vector<4x4xf32>
    %3 = vector.broadcast %1 : vector<1x4xf32> to vector<4x4xf32>
    %4 = arith.mulf %2, %3 : vector<4x4xf32>
    %5 = math.cos %4 : vector<4x4xf32>
    %6 = math.sin %4 : vector<4x4xf32>
    %c0_3 = arith.constant 0 : index
    %c0_4 = arith.constant 0 : index
    %7 = vector.load %arg4[%c0_3, %c0_4] : memref<4x8xf32, #tpu.memory_space<vmem>>, vector<4x8xf32>
    %cst = arith.constant dense<0.000000e+00> : vector<4x8xf32>
    %8 = tpu.matmul %5, %7, %cst {dimension_numbers = #tpu.dot_dimension_numbers<[1], [0], [0], [1], [0, 0, 1, 1], [], []>} : vector<4x4xf32>, vector<4x8xf32>, vector<4x8xf32> -> vector<4x8xf32>
    %c0_5 = arith.constant 0 : index
    %c0_6 = arith.constant 0 : index
    %9 = vector.load %arg5[%c0_5, %c0_6] : memref<4x8xf32, #tpu.memory_space<vmem>>, vector<4x8xf32>
    %cst_7 = arith.constant dense<0.000000e+00> : vector<4x8xf32>
    %10 = tpu.matmul %6, %9, %cst_7 {dimension_numbers = #tpu.dot_dimension_numbers<[1], [0], [0], [1], [0, 0, 1, 1], [], []>} : vector<4x4xf32>, vector<4x8xf32>, vector<4x8xf32> -> vector<4x8xf32>
    %11 = arith.addf %8, %10 : vector<4x8xf32>
    %c0_8 = arith.constant 0 : index
    %c0_9 = arith.constant 0 : index
    %12 = vector.load %arg6[%c0_8, %c0_9] : memref<1x8xf32, #tpu.memory_space<vmem>>, vector<1x8xf32>
    %13 = vector.broadcast %12 : vector<1x8xf32> to vector<4x8xf32>
    %14 = arith.addf %11, %13 : vector<4x8xf32>
    %c0_10 = arith.constant 0 : index
    %c0_11 = arith.constant 0 : index
    %15 = vector.load %arg1[%c0_10, %c0_11] : memref<4x16xf32, #tpu.memory_space<vmem>>, vector<4x16xf32>
    %c0_12 = arith.constant 0 : index
    %c0_13 = arith.constant 0 : index
    %16 = vector.load %arg7[%c0_12, %c0_13] : memref<16x32xf32, #tpu.memory_space<vmem>>, vector<16x32xf32>
    %cst_14 = arith.constant dense<0.000000e+00> : vector<4x32xf32>
    %17 = tpu.matmul %15, %16, %cst_14 {dimension_numbers = #tpu.dot_dimension_numbers<[1], [0], [0], [1], [0, 0, 1, 1], [], []>} : vector<4x16xf32>, vector<16x32xf32>, vector<4x32xf32> -> vector<4x32xf32>
    %c0_15 = arith.constant 0 : index
    %c0_16 = arith.constant 0 : index
    %18 = vector.load %arg8[%c0_15, %c0_16] : memref<8x32xf32, #tpu.memory_space<vmem>>, vector<8x32xf32>
    %cst_17 = arith.constant dense<0.000000e+00> : vector<4x32xf32>
    %19 = tpu.matmul %14, %18, %cst_17 {dimension_numbers = #tpu.dot_dimension_numbers<[1], [0], [0], [1], [0, 0, 1, 1], [], []>} : vector<4x8xf32>, vector<8x32xf32>, vector<4x32xf32> -> vector<4x32xf32>
    %20 = arith.addf %17, %19 : vector<4x32xf32>
    %c0_18 = arith.constant 0 : index
    %c0_19 = arith.constant 0 : index
    %21 = vector.load %arg9[%c0_18, %c0_19] : memref<1x32xf32, #tpu.memory_space<vmem>>, vector<1x32xf32>
    %22 = vector.broadcast %21 : vector<1x32xf32> to vector<4x32xf32>
    %23 = arith.addf %20, %22 : vector<4x32xf32>
    %24 = math.tanh %23 : vector<4x32xf32>
    %c0_20 = arith.constant 0 : index
    %c0_21 = arith.constant 0 : index
    %25 = vector.load %arg10[%c0_20, %c0_21] : memref<32x128xf32, #tpu.memory_space<vmem>>, vector<32x128xf32>
    %cst_22 = arith.constant dense<0.000000e+00> : vector<4x128xf32>
    %26 = tpu.matmul %24, %25, %cst_22 {dimension_numbers = #tpu.dot_dimension_numbers<[1], [0], [0], [1], [0, 0, 1, 1], [], []>} : vector<4x32xf32>, vector<32x128xf32>, vector<4x128xf32> -> vector<4x128xf32>
    %c0_23 = arith.constant 0 : index
    %c0_24 = arith.constant 0 : index
    %27 = vector.load %arg11[%c0_23, %c0_24] : memref<1x128xf32, #tpu.memory_space<vmem>>, vector<1x128xf32>
    %28 = vector.broadcast %27 : vector<1x128xf32> to vector<4x128xf32>
    %29 = arith.addf %26, %28 : vector<4x128xf32>
    %c0_25 = arith.constant 0 : index
    %c0_26 = arith.constant 0 : index
    %30 = vector.load %arg12[%c0_25, %c0_26] : memref<4x128xf32, #tpu.memory_space<vmem>>, vector<4x128xf32>
    tpu.vector_store %arg12[%c0_25, %c0_26], %29 {strides = array<i32>} : memref<4x128xf32, #tpu.memory_space<vmem>>, vector<4x128xf32>,
    return
  }
  func.func @transform_0(%arg0: i32) -> (i32, i32) {
    %c0_i32 = arith.constant 0 : i32
    %c0_i32_0 = arith.constant 0 : i32
    return %arg0, %c0_i32 : i32, i32
  }
  func.func @transform_1(%arg0: i32) -> (i32, i32) {
    %c0_i32 = arith.constant 0 : i32
    %c0_i32_0 = arith.constant 0 : i32
    return %arg0, %c0_i32 : i32, i32
  }
  func.func @transform_2(%arg0: i32) -> (i32, i32) {
    %c0_i32 = arith.constant 0 : i32
    %c0_i32_0 = arith.constant 0 : i32
    %c0_i32_1 = arith.constant 0 : i32
    return %c0_i32, %c0_i32_0 : i32, i32
  }
  func.func @transform_3(%arg0: i32) -> (i32, i32) {
    %c0_i32 = arith.constant 0 : i32
    %c0_i32_0 = arith.constant 0 : i32
    %c0_i32_1 = arith.constant 0 : i32
    return %c0_i32, %c0_i32_0 : i32, i32
  }
  func.func @transform_4(%arg0: i32) -> (i32, i32) {
    %c0_i32 = arith.constant 0 : i32
    %c0_i32_0 = arith.constant 0 : i32
    %c0_i32_1 = arith.constant 0 : i32
    return %c0_i32, %c0_i32_0 : i32, i32
  }
  func.func @transform_5(%arg0: i32) -> (i32, i32) {
    %c0_i32 = arith.constant 0 : i32
    %c0_i32_0 = arith.constant 0 : i32
    %c0_i32_1 = arith.constant 0 : i32
    return %c0_i32, %c0_i32_0 : i32, i32
  }
  func.func @transform_6(%arg0: i32) -> (i32, i32) {
    %c0_i32 = arith.constant 0 : i32
    %c0_i32_0 = arith.constant 0 : i32
    %c0_i32_1 = arith.constant 0 : i32
    return %c0_i32, %c0_i32_0 : i32, i32
  }
  func.func @transform_7(%arg0: i32) -> (i32, i32) {
    %c0_i32 = arith.constant 0 : i32
    %c0_i32_0 = arith.constant 0 : i32
    %c0_i32_1 = arith.constant 0 : i32
    return %c0_i32, %c0_i32_0 : i32, i32
  }
  func.func @transform_8(%arg0: i32) -> (i32, i32) {
    %c0_i32 = arith.constant 0 : i32
    %c0_i32_0 = arith.constant 0 : i32
    %c0_i32_1 = arith.constant 0 : i32
    return %c0_i32, %c0_i32_0 : i32, i32
  }
  func.func @transform_9(%arg0: i32) -> (i32, i32) {
    %c0_i32 = arith.constant 0 : i32
    %c0_i32_0 = arith.constant 0 : i32
    %c0_i32_1 = arith.constant 0 : i32
    return %c0_i32, %c0_i32_0 : i32, i32
  }
  func.func @transform_10(%arg0: i32) -> (i32, i32) {
    %c0_i32 = arith.constant 0 : i32
    %c0_i32_0 = arith.constant 0 : i32
    %c0_i32_1 = arith.constant 0 : i32
    return %c0_i32, %c0_i32_0 : i32, i32
  }
  func.func @transform_11(%arg0: i32) -> (i32, i32) {
    %c0_i32 = arith.constant 0 : i32
    %c0_i32_0 = arith.constant 0 : i32
    return %arg0, %c0_i32 : i32, i32
  }
}

</mosaic_0001>

<llo_original>
// kernel: tpu_custom_call.1
$region0: #{tpu_custom_call.1}
  #allocation0 [shape = 'u32[]', space=smem, size = 0x4, offset = 0x4, fixed_abs, tag = 'smem constant byte address 0x4 - core index']
  #allocation1 [shape = 'u32[144,128]{1,0:T(1,128)}', space=vmem, size = 0x12000, scoped, tag = 'internal scratch']
  %s0 = inlined_call_operand.vmem [shape: f32[4,16], index: 0, kind: input, shape index: {}]
  %s1 = inlined_call_operand.vmem [shape: f32[4,1], index: 1, kind: input, shape index: {}]
  %s2 = inlined_call_operand.vmem [shape: f32[1,4], index: 2, kind: input, shape index: {}]
  %s3 = inlined_call_operand.hbm [shape: f32[4,8], index: 3, kind: input, shape index: {}]
  %s4 = inlined_call_operand.hbm [shape: f32[4,8], index: 4, kind: input, shape index: {}]
  %s5 = inlined_call_operand.vmem [shape: f32[1,8], index: 5, kind: input, shape index: {}]
  %s6 = inlined_call_operand.hbm [shape: f32[16,32], index: 6, kind: input, shape index: {}]
  %s7 = inlined_call_operand.hbm [shape: f32[8,32], index: 7, kind: input, shape index: {}]
  %s8 = inlined_call_operand.vmem [shape: f32[1,32], index: 8, kind: input, shape index: {}]
  %s9 = inlined_call_operand.vmem [shape: f32[32,128], index: 9, kind: input, shape index: {}]
  %s10 = inlined_call_operand.vmem [shape: f32[1,128], index: 10, kind: input, shape index: {}]
  %s11 = inlined_call_operand.hbm [shape: f32[4,128], index: 11, kind: output, shape index: {}]
  %s12 = sld [smem:[#allocation0]]
  $region70: #{tpu_custom_call.1} parent=0
    _
  %s14 = ssub.s32 1, %s12
  %s15 = scalar_select 0, %s14, %s12
  $region1: #{tpu_custom_call.1} parent=0
    #allocation2 [shape = 'u8[2048]{0}', space=vmem, size = 0x800, scoped, tag = 'input window, operand 3, single buffered']
    #allocation3 [shape = 's32[1]{0}', space=sflag, size = 0x4, scoped, tag = 'scoped memory for tpu_custom_call.1']
    #allocation4 [shape = 's32[1]{0}', space=sflag, size = 0x4, scoped, tag = 'scoped memory for tpu_custom_call.1']
    #allocation5 [shape = 'u8[2048]{0}', space=vmem, size = 0x800, scoped, tag = 'input window, operand 4, single buffered']
    #allocation6 [shape = 's32[1]{0}', space=sflag, size = 0x4, scoped, tag = 'scoped memory for tpu_custom_call.1']
    #allocation7 [shape = 'u8[8192]{0}', space=vmem, size = 0x2000, scoped, tag = 'input window, operand 6, single buffered']
    #allocation8 [shape = 'u8[4096]{0}', space=vmem, size = 0x1000, scoped, tag = 'input window, operand 7, single buffered']
    #allocation9 [shape = 's32[1]{0}', space=sflag, size = 0x4, scoped, tag = 'scoped memory for tpu_custom_call.1']
    #allocation10 [shape = 'u8[2048]{0}', space=vmem, size = 0x800, scoped, tag = 'output window, operand 0, single buffered']
    %16 = vsyncpa [#allocation3], 0
    %17 = vsyncpa [#allocation6], 0
    %18 = vsyncpa [#allocation9], 0
    %19 = vsyncpa [#allocation4], 0
    // Predicated region
    $region2: #{tpu_custom_call.1} parent=1 // pred_check
      _
    $region3: #{tpu_custom_call.1} parent=1 // pred_check_branch
      %21 = sbr.rel (0) target = $region5
    $region4: #{tpu_custom_call.1} parent=1 // pred_region
      _
    $region5: #{tpu_custom_call.1} parent=1 // pred_fallthru
      _
    // Predicated region
    $region6: #{tpu_custom_call.1} parent=1 // pred_check
      _
    $region7: #{tpu_custom_call.1} parent=1 // pred_check_branch
      %23 = sbr.rel (0) target = $region9
    $region8: #{tpu_custom_call.1} parent=1 // pred_region
      _
    $region9: #{tpu_custom_call.1} parent=1 // pred_fallthru
      _
    // Predicated region
    $region10: #{tpu_custom_call.1} parent=1 // pred_check
      _
    $region11: #{tpu_custom_call.1} parent=1 // pred_check_branch
      %25 = sbr.rel (0) target = $region13
    $region12: #{tpu_custom_call.1} parent=1 // pred_region
      _
    $region13: #{tpu_custom_call.1} parent=1 // pred_fallthru
      _
    // Predicated region
    $region14: #{tpu_custom_call.1} parent=1 // pred_check
      _
    $region15: #{tpu_custom_call.1} parent=1 // pred_check_branch
      %27 = sbr.rel (0) target = $region17
    $region16: #{tpu_custom_call.1} parent=1 // pred_region
      %s29 = ssub.s32 64, 64
      %30 = vsyncadd [#allocation3], %s29
      %s32 = sshll.u32 [#allocation2], 4
      %s33 = int_to_ptr.vmem [resolvable:$true] %s32
      %35 = dma.hbm_to_vmem [thread:$0]  %s3, 64, %s33, [#allocation3]
    $region17: #{tpu_custom_call.1} parent=1 // pred_fallthru
      _
    // Predicated region
    $region18: #{tpu_custom_call.1} parent=1 // pred_check
      _
    $region19: #{tpu_custom_call.1} parent=1 // pred_check_branch
      %37 = sbr.rel (0) target = $region21
    $region20: #{tpu_custom_call.1} parent=1 // pred_region
      %s39 = ssub.s32 64, 64
      %40 = vsyncadd [#allocation6], %s39
      %s42 = sshll.u32 [#allocation5], 4
      %s43 = int_to_ptr.vmem [resolvable:$true] %s42
      %45 = dma.hbm_to_vmem [thread:$0]  %s4, 64, %s43, [#allocation6]
    $region21: #{tpu_custom_call.1} parent=1 // pred_fallthru
      _
    // Predicated region
    $region22: #{tpu_custom_call.1} parent=1 // pred_check
      _
    $region23: #{tpu_custom_call.1} parent=1 // pred_check_branch
      %47 = sbr.rel (0) target = $region25
    $region24: #{tpu_custom_call.1} parent=1 // pred_region
      _
    $region25: #{tpu_custom_call.1} parent=1 // pred_fallthru
      _
    // Predicated region
    $region26: #{tpu_custom_call.1} parent=1 // pred_check
      _
    $region27: #{tpu_custom_call.1} parent=1 // pred_check_branch
      %49 = sbr.rel (0) target = $region29
    $region28: #{tpu_custom_call.1} parent=1 // pred_region
      %s51 = ssub.s32 256, 256
      %52 = vsyncadd [#allocation6], %s51
      %s53 = sshll.u32 [#allocation7], 4
      %s54 = int_to_ptr.vmem [resolvable:$true] %s53
      %59 = dma.hbm_to_vmem [thread:$0]  %s6, 256, %s54, [#allocation6], 128, 128, 8
    $region29: #{tpu_custom_call.1} parent=1 // pred_fallthru
      _
    // Predicated region
    $region30: #{tpu_custom_call.1} parent=1 // pred_check
      _
    $region31: #{tpu_custom_call.1} parent=1 // pred_check_branch
      %61 = sbr.rel (0) target = $region33
    $region32: #{tpu_custom_call.1} parent=1 // pred_region
      %s63 = ssub.s32 128, 128
      %64 = vsyncadd [#allocation9], %s63
      %s66 = sshll.u32 [#allocation8], 4
      %s67 = int_to_ptr.vmem [resolvable:$true] %s66
      %69 = dma.hbm_to_vmem [thread:$0]  %s7, 128, %s67, [#allocation9]
    $region33: #{tpu_custom_call.1} parent=1 // pred_fallthru
      _
    // Predicated region
    $region34: #{tpu_custom_call.1} parent=1 // pred_check
      _
    $region35: #{tpu_custom_call.1} parent=1 // pred_check_branch
      %71 = sbr.rel (0) target = $region37
    $region36: #{tpu_custom_call.1} parent=1 // pred_region
      _
    $region37: #{tpu_custom_call.1} parent=1 // pred_fallthru
      _
    // Predicated region
    $region38: #{tpu_custom_call.1} parent=1 // pred_check
      _
    $region39: #{tpu_custom_call.1} parent=1 // pred_check_branch
      %73 = sbr.rel (0) target = $region41
    $region40: #{tpu_custom_call.1} parent=1 // pred_region
      _
    $region41: #{tpu_custom_call.1} parent=1 // pred_fallthru
      _
    // Predicated region
    $region42: #{tpu_custom_call.1} parent=1 // pred_check
      _
    $region43: #{tpu_custom_call.1} parent=1 // pred_check_branch
      %75 = sbr.rel (0) target = $region45
    $region44: #{tpu_custom_call.1} parent=1 // pred_region
      _
    $region45: #{tpu_custom_call.1} parent=1 // pred_fallthru
      _
    // Predicated region
    $region46: #{tpu_custom_call.1} parent=1 // pred_check
      _
    $region47: #{tpu_custom_call.1} parent=1 // pred_check_branch
      %77 = sbr.rel (0) target = $region49
    $region48: #{tpu_custom_call.1} parent=1 // pred_region
      %78 = dma.done [#allocation3], 64
    $region49: #{tpu_custom_call.1} parent=1 // pred_fallthru
      _
    // Predicated region
    $region50: #{tpu_custom_call.1} parent=1 // pred_check
      _
    $region51: #{tpu_custom_call.1} parent=1 // pred_check_branch
      %80 = sbr.rel (0) target = $region53
    $region52: #{tpu_custom_call.1} parent=1 // pred_region
      %81 = dma.done [#allocation6], 64
    $region53: #{tpu_custom_call.1} parent=1 // pred_fallthru
      _
    // Predicated region
    $region54: #{tpu_custom_call.1} parent=1 // pred_check
      _
    $region55: #{tpu_custom_call.1} parent=1 // pred_check_branch
      %83 = sbr.rel (0) target = $region57
    $region56: #{tpu_custom_call.1} parent=1 // pred_region
      %84 = dma.done [#allocation6], 256
    $region57: #{tpu_custom_call.1} parent=1 // pred_fallthru
      _
    // Predicated region
    $region58: #{tpu_custom_call.1} parent=1 // pred_check
      _
    $region59: #{tpu_custom_call.1} parent=1 // pred_check_branch
      %86 = sbr.rel (0) target = $region61
    $region60: #{tpu_custom_call.1} parent=1 // pred_region
      %87 = dma.done [#allocation9], 128
    $region61: #{tpu_custom_call.1} parent=1 // pred_fallthru
      _
    %v88 = vld [vmem:[%s1] sm:$0xf]
    %v89 = vld [vmem:[%s2] sm:$0x1]
    %91 = vset.pattern.permute.xlu0 0
    %92 = vperm.xlu0 %91, %v88
    %v93 = vpop.permute.xlu0 %92
    %v96 = vlaneseq
    %v97 = vshrl.u32 %v96, 7
    %v98 = vsub.s32 0, %v97
    %v99 = vrot.slane %v89, %v98
    %v101 = vmul.f32 %v93, %v99
    %v102 = vand.u32 2147483647, %v101
    %vm103 = vcmp.le.f32.partialorder %v102, 0.7853982
    %vm104 = vcmp.lt.s32.totalorder %v101, 0
    %v105 = vand.u32 %v101, 2139095040
    %v106 = vshrl.u32 %v105, 23
    %v107 = vsub.s32 %v106, 127
    %v108 = vand.u32 2147483647, %v101
    %v109 = vand.u32 %v108, 8388607
    %v110 = vor.u32 %v109, 8388608
    %v111 = vsub.s32 0, %v110
    %v112 = vadd.s32 %v107, 1
    %vm113 = vcmp.gt.s32.totalorder %v112, 0
    %v114 = vsel %vm113, %v112, 0
    %v115 = vshrl.u32 %v114, 5
    %v116 = vand.u32 %v114, 31
    %v117 = vsub.s32 32, %v116
    %v118 = vshrl.u32 683565275, %v117
    %v119 = vshll.u32 683565275, %v116
    %v120 = vshrl.u32 2475754826, %v117
    %v121 = vor.u32 %v119, %v120
    %v122 = vshll.u32 2475754826, %v116
    %v123 = vshrl.u32 2131351028, %v117
    %v124 = vor.u32 %v122, %v123
    %v125 = vshll.u32 2131351028, %v116
    %v126 = vshrl.u32 2102212464, %v117
    %v127 = vor.u32 %v125, %v126
    %v128 = vshll.u32 2102212464, %v116
    %v129 = vshrl.u32 920167782, %v117
    %v130 = vor.u32 %v128, %v129
    %v131 = vshll.u32 920167782, %v116
    %v132 = vshrl.u32 1326507024, %v117
    %v133 = vor.u32 %v131, %v132
    %vm134 = vcmp.lt.s32.totalorder %v115, 1
    %vm135 = vcmp.lt.s32.totalorder %v115, 2
    %vm136 = vcmp.lt.s32.totalorder %v115, 3
    %vm137 = vcmp.lt.s32.totalorder %v115, 4
    %v138 = vsel %vm134, %v118, %v121
    %v139 = vsel %vm137, %v127, 2102212464
    %v140 = vsel %vm136, %v124, %v139
    %v141 = vsel %vm135, %v138, %v140
    %v142 = vsel %vm134, %v121, %v124
    %v143 = vsel %vm137, %v130, 920167782
    %v144 = vsel %vm136, %v127, %v143
    %v145 = vsel %vm135, %v142, %v144
    %v146 = vsel %vm134, %v124, %v127
    %v147 = vsel %vm137, %v133, 1326507024
    %v148 = vsel %vm136, %v130, %v147
    %v149 = vsel %vm135, %v146, %v148
    %v150 = vshll.u32 %v110, 8
    %v151 = vmul.u32.u64.compose %v150, %v149
    %v152 = vextract.low.u32 %v151
    %v153 = vextract.high.u32 %v151
    %v154 = vmul.u32.u64.compose %v150, %v145
    %v155 = vextract.low.u32 %v154
    %v156 = vextract.high.u32 %v154
    %v157 = vmul.u32 %v150, %v141
    %v158 = vadd.s32 %v153, %v155
    %vm159 = vc.u32 %v153, %v155
    %v160 = vadd.s32 %v156, 1
    %v161 = vsel %vm159, %v160, %v156
    %v162 = vadd.s32 %v157, %v161
    %v163 = vadd.s32 %v162, 536870912
    %v164 = vshrl.u32 %v163, 30
    %v165 = vshll.u32 %v164, 30
    %v166 = vsub.s32 %v162, %v165
    %vm167 = vcmp.lt.s32.totalorder %v166, 0
    %v168 = vsub.s32 0, %v166
    %v169 = vsel %vm167, %v168, %v166
    %v170 = vclz %v169
    %v171 = vsub.s32 %v170, 2
    %vm172 = vcmp.gt.s32.totalorder 0, %v171
    %v173 = vsel %vm172, 0, %v171
    %v174 = vsub.s32 32, %v173
    %v175 = vshll.u32 %v166, %v173
    %v176 = vshrl.u32 %v158, %v174
    %v177 = vor.u32 %v175, %v176
    %v178 = vsub.s32 4294967266, %v173
    %v179 = vadd.s32 %v178, 127
    %v180 = vshll.u32 %v179, 23
    %v181 = vor.u32 4788187, %v180
    %v182 = vand.u32 2147483647, %v181
    %v184 = vcvt.s32.f32 %v177
    %v185 = vmul.f32 %v184, %v182
    %v186 = vxor.u32 %v185, 2147483648
    %v187 = vsel %vm104, %v186, %v185
    %v188 = vsub.s32 4, %v164
    %v189 = vsel %vm104, %v188, %v164
    %v190 = vsel %vm103, %v101, %v187
    %v191 = vsel %vm103, 0, %v189
    %v192 = vcosq.f32.pop %v190
    %v193 = vsinq.f32.pop %v190
    %vm194 = vweird.f32 %v101
    %v195 = vand.u32 %v191, 3
    %vm196 = vcmp.lt.s32.totalorder %v195, 2
    %vm197 = vcmp.eq.s32.totalorder %v195, 0
    %v198 = vxor.u32 %v193, 2147483648
    %v199 = vsel %vm197, %v192, %v198
    %vm200 = vcmp.eq.s32.totalorder %v195, 2
    %v201 = vxor.u32 %v192, 2147483648
    %v202 = vsel %vm200, %v201, %v193
    %v203 = vsel %vm196, %v199, %v202
    %v204 = vsel %vm194, nan, %v203
    %v205 = vand.u32 2147483647, %v101
    %vm206 = vcmp.le.f32.partialorder %v205, 0.7853982
    %vm207 = vcmp.lt.s32.totalorder %v101, 0
    %v208 = vand.u32 %v101, 2139095040
    %v209 = vshrl.u32 %v208, 23
    %v210 = vsub.s32 %v209, 127
    %v211 = vand.u32 2147483647, %v101
    %v212 = vand.u32 %v211, 8388607
    %v213 = vor.u32 %v212, 8388608
    %v214 = vsub.s32 0, %v213
    %v215 = vadd.s32 %v210, 1
    %vm216 = vcmp.gt.s32.totalorder %v215, 0
    %v217 = vsel %vm216, %v215, 0
    %v218 = vshrl.u32 %v217, 5
    %v219 = vand.u32 %v217, 31
    %v220 = vsub.s32 32, %v219
    %v221 = vshrl.u32 683565275, %v220
    %v222 = vshll.u32 683565275, %v219
    %v223 = vshrl.u32 2475754826, %v220
    %v224 = vor.u32 %v222, %v223
    %v225 = vshll.u32 2475754826, %v219
    %v226 = vshrl.u32 2131351028, %v220
    %v227 = vor.u32 %v225, %v226
    %v228 = vshll.u32 2131351028, %v219
    %v229 = vshrl.u32 2102212464, %v220
    %v230 = vor.u32 %v228, %v229
    %v231 = vshll.u32 2102212464, %v219
    %v232 = vshrl.u32 920167782, %v220
    %v233 = vor.u32 %v231, %v232
    %v234 = vshll.u32 920167782, %v219
    %v235 = vshrl.u32 1326507024, %v220
    %v236 = vor.u32 %v234, %v235
    %vm237 = vcmp.lt.s32.totalorder %v218, 1
    %vm238 = vcmp.lt.s32.totalorder %v218, 2
    %vm239 = vcmp.lt.s32.totalorder %v218, 3
    %vm240 = vcmp.lt.s32.totalorder %v218, 4
    %v241 = vsel %vm237, %v221, %v224
    %v242 = vsel %vm240, %v230, 2102212464
    %v243 = vsel %vm239, %v227, %v242
    %v244 = vsel %vm238, %v241, %v243
    %v245 = vsel %vm237, %v224, %v227
    %v246 = vsel %vm240, %v233, 920167782
    %v247 = vsel %vm239, %v230, %v246
    %v248 = vsel %vm238, %v245, %v247
    %v249 = vsel %vm237, %v227, %v230
    %v250 = vsel %vm240, %v236, 1326507024
    %v251 = vsel %vm239, %v233, %v250
    %v252 = vsel %vm238, %v249, %v251
    %v253 = vshll.u32 %v213, 8
    %v254 = vmul.u32.u64.compose %v253, %v252
    %v255 = vextract.low.u32 %v254
    %v256 = vextract.high.u32 %v254
    %v257 = vmul.u32.u64.compose %v253, %v248
    %v258 = vextract.low.u32 %v257
    %v259 = vextract.high.u32 %v257
    %v260 = vmul.u32 %v253, %v244
    %v261 = vadd.s32 %v256, %v258
    %vm262 = vc.u32 %v256, %v258
    %v263 = vadd.s32 %v259, 1
    %v264 = vsel %vm262, %v263, %v259
    %v265 = vadd.s32 %v260, %v264
    %v266 = vadd.s32 %v265, 536870912
    %v267 = vshrl.u32 %v266, 30
    %v268 = vshll.u32 %v267, 30
    %v269 = vsub.s32 %v265, %v268
    %vm270 = vcmp.lt.s32.totalorder %v269, 0
    %v271 = vsub.s32 0, %v269
    %v272 = vsel %vm270, %v271, %v269
    %v273 = vclz %v272
    %v274 = vsub.s32 %v273, 2
    %vm275 = vcmp.gt.s32.totalorder 0, %v274
    %v276 = vsel %vm275, 0, %v274
    %v277 = vsub.s32 32, %v276
    %v278 = vshll.u32 %v269, %v276
    %v279 = vshrl.u32 %v261, %v277
    %v280 = vor.u32 %v278, %v279
    %v281 = vsub.s32 4294967266, %v276
    %v282 = vadd.s32 %v281, 127
    %v283 = vshll.u32 %v282, 23
    %v284 = vor.u32 4788187, %v283
    %v285 = vand.u32 2147483647, %v284
    %v287 = vcvt.s32.f32 %v280
    %v288 = vmul.f32 %v287, %v285
    %v289 = vxor.u32 %v288, 2147483648
    %v290 = vsel %vm207, %v289, %v288
    %v291 = vsub.s32 4, %v267
    %v292 = vsel %vm207, %v291, %v267
    %v293 = vsel %vm206, %v101, %v290
    %v294 = vsel %vm206, 0, %v292
    %v295 = vcosq.f32.pop %v293
    %v296 = vsinq.f32.pop %v293
    %vm297 = vweird.f32 %v101
    %v298 = vadd.s32 %v294, 3
    %v299 = vand.u32 %v298, 3
    %vm300 = vcmp.lt.s32.totalorder %v299, 2
    %vm301 = vcmp.eq.s32.totalorder %v299, 0
    %v302 = vxor.u32 %v296, 2147483648
    %v303 = vsel %vm301, %v295, %v302
    %vm304 = vcmp.eq.s32.totalorder %v299, 2
    %v305 = vxor.u32 %v295, 2147483648
    %v306 = vsel %vm304, %v305, %v296
    %v307 = vsel %vm300, %v303, %v306
    %v308 = vsel %vm297, nan, %v307
    %v309 = vld [vmem:[#allocation2] sm:$0xf]
    %v310 = vld [vmem:[#allocation5] sm:$0xf]
    %vm311 = vcmask 31744
    %v313 = vsel %vm311, %v308, 0
    %vm315 = vcmask 1043456
    %v317 = vsel %vm315, %v310, 0
    %319 = vmatprep.subr.mxu0 0.0
    %320 = vmatpush1.msra.mxu0 %v317
    %321 = vmatprep.subr.mxu0 0.0
    %322 = vmatpush1.msra.mxu0 0.0
    %323 = vmatprep.subr.mxu0 0.0
    %324 = vmatpush1.msra.mxu0 0.0
    %325 = vmatprep.subr.mxu0 0.0
    %326 = vmatpush1.msra.mxu0 0.0
    %327 = vmatprep.subr.mxu0 0.0
    %328 = vmatpush1.msra.mxu0 0.0
    %329 = vmatprep.subr.mxu0 0.0
    %330 = vmatpush1.msra.mxu0 0.0
    %331 = vmatprep.subr.mxu0 0.0
    %332 = vmatpush1.msra.mxu0 0.0
    %333 = vmatprep.subr.mxu0 0.0
    %334 = vmatpush1.msra.mxu0 0.0
    %335 = vmatprep.subr.mxu0 0.0
    %336 = vmatpush1.msra.mxu0 0.0
    %337 = vmatprep.subr.mxu0 0.0
    %338 = vmatpush1.msra.mxu0 0.0
    %339 = vmatprep.subr.mxu0 0.0
    %340 = vmatpush1.msra.mxu0 0.0
    %341 = vmatprep.subr.mxu0 0.0
    %342 = vmatpush1.msra.mxu0 0.0
    %343 = vmatprep.subr.mxu0 0.0
    %344 = vmatpush1.msra.mxu0 0.0
    %345 = vmatprep.subr.mxu0 0.0
    %346 = vmatpush1.msra.mxu0 0.0
    %347 = vmatprep.subr.mxu0 0.0
    %348 = vmatpush1.msra.mxu0 0.0
    %349 = vmatprep.subr.mxu0 0.0
    %350 = vmatpush1.msra.mxu0 0.0
    %351 = vmatprep.subr.mxu0 0.0
    %352 = vmatpush1.msra.mxu0 0.0
    %353 = vmatprep.subr.mxu0 0.0
    %354 = vmatpush1.msra.mxu0 0.0
    %355 = vmatprep.subr.mxu0 0.0
    %356 = vmatpush1.msra.mxu0 0.0
    %357 = vmatprep.subr.mxu0 0.0
    %358 = vmatpush1.msra.mxu0 0.0
    %359 = vmatprep.subr.mxu0 0.0
    %360 = vmatpush1.msra.mxu0 0.0
    %361 = vmatprep.subr.mxu0 0.0
    %362 = vmatpush1.msra.mxu0 0.0
    %363 = vmatprep.subr.mxu0 0.0
    %364 = vmatpush1.msra.mxu0 0.0
    %365 = vmatprep.subr.mxu0 0.0
    %366 = vmatpush1.msra.mxu0 0.0
    %367 = vmatprep.subr.mxu0 0.0
    %368 = vmatpush1.msra.mxu0 0.0
    %369 = vmatprep.subr.mxu0 0.0
    %370 = vmatpush1.msra.mxu0 0.0
    %371 = vmatprep.subr.mxu0 0.0
    %372 = vmatpush1.msra.mxu0 0.0
    %373 = vmatprep.subr.mxu0 0.0
    %374 = vmatpush1.msra.mxu0 0.0
    %375 = vmatprep.subr.mxu0 0.0
    %376 = vmatpush1.msra.mxu0 0.0
    %377 = vmatprep.subr.mxu0 0.0
    %378 = vmatpush1.msra.mxu0 0.0
    %379 = vmatprep.subr.mxu0 0.0
    %380 = vmatpush1.msra.mxu0 0.0
    %381 = vmatprep.subr.mxu0 0.0
    %382 = vmatpush1.msra.mxu0 0.0
    %383 = vmatprep.mubr.f32.mxu0 0.0
    %384 = vmatmul.mubr.f32.gmra.mrb[0].mxu0 %v313
    %v385 = vpop.f32.mrb[0].mxu0
    %v386 = vadd.f32 0.0, %v385
    %v387 = vpop.f32.mrb[0].mxu0
    %388 = vdwg.mxu0
    %v390 = vsel %vm311, %v204, 0
    %v393 = vsel %vm315, %v309, 0
    %395 = vmatprep.subr.mxu0 0.0
    %396 = vmatpush1.msra.mxu0 %v393
    %397 = vmatprep.subr.mxu0 0.0
    %398 = vmatpush1.msra.mxu0 0.0
    %399 = vmatprep.subr.mxu0 0.0
    %400 = vmatpush1.msra.mxu0 0.0
    %401 = vmatprep.subr.mxu0 0.0
    %402 = vmatpush1.msra.mxu0 0.0
    %403 = vmatprep.subr.mxu0 0.0
    %404 = vmatpush1.msra.mxu0 0.0
    %405 = vmatprep.subr.mxu0 0.0
    %406 = vmatpush1.msra.mxu0 0.0
    %407 = vmatprep.subr.mxu0 0.0
    %408 = vmatpush1.msra.mxu0 0.0
    %409 = vmatprep.subr.mxu0 0.0
    %410 = vmatpush1.msra.mxu0 0.0
    %411 = vmatprep.subr.mxu0 0.0
    %412 = vmatpush1.msra.mxu0 0.0
    %413 = vmatprep.subr.mxu0 0.0
    %414 = vmatpush1.msra.mxu0 0.0
    %415 = vmatprep.subr.mxu0 0.0
    %416 = vmatpush1.msra.mxu0 0.0
    %417 = vmatprep.subr.mxu0 0.0
    %418 = vmatpush1.msra.mxu0 0.0
    %419 = vmatprep.subr.mxu0 0.0
    %420 = vmatpush1.msra.mxu0 0.0
    %421 = vmatprep.subr.mxu0 0.0
    %422 = vmatpush1.msra.mxu0 0.0
    %423 = vmatprep.subr.mxu0 0.0
    %424 = vmatpush1.msra.mxu0 0.0
    %425 = vmatprep.subr.mxu0 0.0
    %426 = vmatpush1.msra.mxu0 0.0
    %427 = vmatprep.subr.mxu0 0.0
    %428 = vmatpush1.msra.mxu0 0.0
    %429 = vmatprep.subr.mxu0 0.0
    %430 = vmatpush1.msra.mxu0 0.0
    %431 = vmatprep.subr.mxu0 0.0
    %432 = vmatpush1.msra.mxu0 0.0
    %433 = vmatprep.subr.mxu0 0.0
    %434 = vmatpush1.msra.mxu0 0.0
    %435 = vmatprep.subr.mxu0 0.0
    %436 = vmatpush1.msra.mxu0 0.0
    %437 = vmatprep.subr.mxu0 0.0
    %438 = vmatpush1.msra.mxu0 0.0
    %439 = vmatprep.subr.mxu0 0.0
    %440 = vmatpush1.msra.mxu0 0.0
    %441 = vmatprep.subr.mxu0 0.0
    %442 = vmatpush1.msra.mxu0 0.0
    %443 = vmatprep.subr.mxu0 0.0
    %444 = vmatpush1.msra.mxu0 0.0
    %445 = vmatprep.subr.mxu0 0.0
    %446 = vmatpush1.msra.mxu0 0.0
    %447 = vmatprep.subr.mxu0 0.0
    %448 = vmatpush1.msra.mxu0 0.0
    %449 = vmatprep.subr.mxu0 0.0
    %450 = vmatpush1.msra.mxu0 0.0
    %451 = vmatprep.subr.mxu0 0.0
    %452 = vmatpush1.msra.mxu0 0.0
    %453 = vmatprep.subr.mxu0 0.0
    %454 = vmatpush1.msra.mxu0 0.0
    %455 = vmatprep.subr.mxu0 0.0
    %456 = vmatpush1.msra.mxu0 0.0
    %457 = vmatprep.subr.mxu0 0.0
    %458 = vmatpush1.msra.mxu0 0.0
    %459 = vmatprep.mubr.f32.mxu0 0.0
    %460 = vmatmul.mubr.f32.gmra.mrb[0].mxu0 %v390
    %v461 = vpop.f32.mrb[0].mxu0
    %v462 = vadd.f32 %v386, %v461
    %v463 = vpop.f32.mrb[0].mxu0
    %464 = vdwg.mxu0
    %v465 = vld [vmem:[%s5] sm:$0x1]
    %v467 = vlaneseq
    %v468 = vshrl.u32 %v467, 7
    %v469 = vsub.s32 0, %v468
    %v470 = vrot.slane %v465, %v469
    %v472 = vadd.f32 %v462, %v470
    %v473 = vld [vmem:[%s0] sm:$0xf]
    %v474 = vld [vmem:[#allocation7] sm:$0xff]
    %v475 = vld [vmem:[#allocation7 + $0x8] sm:$0xff]
    %v476 = vld [vmem:[#allocation8] sm:$0xff]
    %vm477 = vcmask 64512
    %v479 = vsel %vm477, %v472, 0
    %481 = vmatprep.subr.mxu0 0.0
    %482 = vmatpush1.msra.mxu0 %v476
    %483 = vmatprep.subr.mxu0 0.0
    %484 = vmatpush1.msra.mxu0 0.0
    %485 = vmatprep.subr.mxu0 0.0
    %486 = vmatpush1.msra.mxu0 0.0
    %487 = vmatprep.subr.mxu0 0.0
    %488 = vmatpush1.msra.mxu0 0.0
    %489 = vmatprep.subr.mxu0 0.0
    %490 = vmatpush1.msra.mxu0 0.0
    %491 = vmatprep.subr.mxu0 0.0
    %492 = vmatpush1.msra.mxu0 0.0
    %493 = vmatprep.subr.mxu0 0.0
    %494 = vmatpush1.msra.mxu0 0.0
    %495 = vmatprep.subr.mxu0 0.0
    %496 = vmatpush1.msra.mxu0 0.0
    %497 = vmatprep.subr.mxu0 0.0
    %498 = vmatpush1.msra.mxu0 0.0
    %499 = vmatprep.subr.mxu0 0.0
    %500 = vmatpush1.msra.mxu0 0.0
    %501 = vmatprep.subr.mxu0 0.0
    %502 = vmatpush1.msra.mxu0 0.0
    %503 = vmatprep.subr.mxu0 0.0
    %504 = vmatpush1.msra.mxu0 0.0
    %505 = vmatprep.subr.mxu0 0.0
    %506 = vmatpush1.msra.mxu0 0.0
    %507 = vmatprep.subr.mxu0 0.0
    %508 = vmatpush1.msra.mxu0 0.0
    %509 = vmatprep.subr.mxu0 0.0
    %510 = vmatpush1.msra.mxu0 0.0
    %511 = vmatprep.subr.mxu0 0.0
    %512 = vmatpush1.msra.mxu0 0.0
    %513 = vmatprep.subr.mxu0 0.0
    %514 = vmatpush1.msra.mxu0 0.0
    %515 = vmatprep.subr.mxu0 0.0
    %516 = vmatpush1.msra.mxu0 0.0
    %517 = vmatprep.subr.mxu0 0.0
    %518 = vmatpush1.msra.mxu0 0.0
    %519 = vmatprep.subr.mxu0 0.0
    %520 = vmatpush1.msra.mxu0 0.0
    %521 = vmatprep.subr.mxu0 0.0
    %522 = vmatpush1.msra.mxu0 0.0
    %523 = vmatprep.subr.mxu0 0.0
    %524 = vmatpush1.msra.mxu0 0.0
    %525 = vmatprep.subr.mxu0 0.0
    %526 = vmatpush1.msra.mxu0 0.0
    %527 = vmatprep.subr.mxu0 0.0
    %528 = vmatpush1.msra.mxu0 0.0
    %529 = vmatprep.subr.mxu0 0.0
    %530 = vmatpush1.msra.mxu0 0.0
    %531 = vmatprep.subr.mxu0 0.0
    %532 = vmatpush1.msra.mxu0 0.0
    %533 = vmatprep.subr.mxu0 0.0
    %534 = vmatpush1.msra.mxu0 0.0
    %535 = vmatprep.subr.mxu0 0.0
    %536 = vmatpush1.msra.mxu0 0.0
    %537 = vmatprep.subr.mxu0 0.0
    %538 = vmatpush1.msra.mxu0 0.0
    %539 = vmatprep.subr.mxu0 0.0
    %540 = vmatpush1.msra.mxu0 0.0
    %541 = vmatprep.subr.mxu0 0.0
    %542 = vmatpush1.msra.mxu0 0.0
    %543 = vmatprep.subr.mxu0 0.0
    %544 = vmatpush1.msra.mxu0 0.0
    %545 = vmatprep.mubr.f32.mxu0 0.0
    %546 = vmatmul.mubr.f32.gmra.mrb[0].mxu0 %v479
    %v547 = vpop.f32.mrb[0].mxu0
    %v548 = vadd.f32 0.0, %v547
    %v549 = vpop.f32.mrb[0].mxu0
    %550 = vdwg.mxu0
    %vm551 = vcmask 130048
    %v553 = vsel %vm551, %v473, 0
    %555 = vmatprep.subr.mxu0 0.0
    %556 = vmatpush1.msra.mxu0 %v474
    %557 = vmatprep.subr.mxu0 0.0
    %558 = vmatpush1.msra.mxu0 %v475
    %559 = vmatprep.subr.mxu0 0.0
    %560 = vmatpush1.msra.mxu0 0.0
    %561 = vmatprep.subr.mxu0 0.0
    %562 = vmatpush1.msra.mxu0 0.0
    %563 = vmatprep.subr.mxu0 0.0
    %564 = vmatpush1.msra.mxu0 0.0
    %565 = vmatprep.subr.mxu0 0.0
    %566 = vmatpush1.msra.mxu0 0.0
    %567 = vmatprep.subr.mxu0 0.0
    %568 = vmatpush1.msra.mxu0 0.0
    %569 = vmatprep.subr.mxu0 0.0
    %570 = vmatpush1.msra.mxu0 0.0
    %571 = vmatprep.subr.mxu0 0.0
    %572 = vmatpush1.msra.mxu0 0.0
    %573 = vmatprep.subr.mxu0 0.0
    %574 = vmatpush1.msra.mxu0 0.0
    %575 = vmatprep.subr.mxu0 0.0
    %576 = vmatpush1.msra.mxu0 0.0
    %577 = vmatprep.subr.mxu0 0.0
    %578 = vmatpush1.msra.mxu0 0.0
    %579 = vmatprep.subr.mxu0 0.0
    %580 = vmatpush1.msra.mxu0 0.0
    %581 = vmatprep.subr.mxu0 0.0
    %582 = vmatpush1.msra.mxu0 0.0
    %583 = vmatprep.subr.mxu0 0.0
    %584 = vmatpush1.msra.mxu0 0.0
    %585 = vmatprep.subr.mxu0 0.0
    %586 = vmatpush1.msra.mxu0 0.0
    %587 = vmatprep.subr.mxu0 0.0
    %588 = vmatpush1.msra.mxu0 0.0
    %589 = vmatprep.subr.mxu0 0.0
    %590 = vmatpush1.msra.mxu0 0.0
    %591 = vmatprep.subr.mxu0 0.0
    %592 = vmatpush1.msra.mxu0 0.0
    %593 = vmatprep.subr.mxu0 0.0
    %594 = vmatpush1.msra.mxu0 0.0
    %595 = vmatprep.subr.mxu0 0.0
    %596 = vmatpush1.msra.mxu0 0.0
    %597 = vmatprep.subr.mxu0 0.0
    %598 = vmatpush1.msra.mxu0 0.0
    %599 = vmatprep.subr.mxu0 0.0
    %600 = vmatpush1.msra.mxu0 0.0
    %601 = vmatprep.subr.mxu0 0.0
    %602 = vmatpush1.msra.mxu0 0.0
    %603 = vmatprep.subr.mxu0 0.0
    %604 = vmatpush1.msra.mxu0 0.0
    %605 = vmatprep.subr.mxu0 0.0
    %606 = vmatpush1.msra.mxu0 0.0
    %607 = vmatprep.subr.mxu0 0.0
    %608 = vmatpush1.msra.mxu0 0.0
    %609 = vmatprep.subr.mxu0 0.0
    %610 = vmatpush1.msra.mxu0 0.0
    %611 = vmatprep.subr.mxu0 0.0
    %612 = vmatpush1.msra.mxu0 0.0
    %613 = vmatprep.subr.mxu0 0.0
    %614 = vmatpush1.msra.mxu0 0.0
    %615 = vmatprep.subr.mxu0 0.0
    %616 = vmatpush1.msra.mxu0 0.0
    %617 = vmatprep.subr.mxu0 0.0
    %618 = vmatpush1.msra.mxu0 0.0
    %619 = vmatprep.mubr.f32.mxu0 0.0
    %620 = vmatmul.mubr.f32.gmra.mrb[0].mxu0 %v553
    %v621 = vpop.f32.mrb[0].mxu0
    %v622 = vadd.f32 %v548, %v621
    %v623 = vpop.f32.mrb[0].mxu0
    %624 = vdwg.mxu0
    %v625 = vld [vmem:[%s8] sm:$0x1]
    %v627 = vlaneseq
    %v628 = vshrl.u32 %v627, 7
    %v629 = vsub.s32 0, %v628
    %v630 = vrot.slane %v625, %v629
    %v632 = vadd.f32 %v622, %v630
    %v633 = vtanh.pop %v632
    %v634 = vld [vmem:[%s9] sm:$0xff]
    %v635 = vld [vmem:[%s9 + $0x8] sm:$0xff]
    %v636 = vld [vmem:[%s9 + $0x10] sm:$0xff]
    %v637 = vld [vmem:[%s9 + $0x18] sm:$0xff]
    %v638 = vld [vmem:[%s10] sm:$0x1]
    %v640 = vlaneseq
    %v641 = vshrl.u32 %v640, 7
    %v642 = vsub.s32 0, %v641
    %v643 = vrot.slane %v638, %v642
    %vm645 = vcmask 261120
    %v647 = vsel %vm645, %v633, 0
    %649 = vmatprep.subr.mxu0 0.0
    %650 = vmatpush1.msra.mxu0 %v634
    %651 = vmatprep.subr.mxu0 0.0
    %652 = vmatpush1.msra.mxu0 %v635
    %653 = vmatprep.subr.mxu0 0.0
    %654 = vmatpush1.msra.mxu0 %v636
    %655 = vmatprep.subr.mxu0 0.0
    %656 = vmatpush1.msra.mxu0 %v637
    %657 = vmatprep.subr.mxu0 0.0
    %658 = vmatpush1.msra.mxu0 0.0
    %659 = vmatprep.subr.mxu0 0.0
    %660 = vmatpush1.msra.mxu0 0.0
    %661 = vmatprep.subr.mxu0 0.0
    %662 = vmatpush1.msra.mxu0 0.0
    %663 = vmatprep.subr.mxu0 0.0
    %664 = vmatpush1.msra.mxu0 0.0
    %665 = vmatprep.subr.mxu0 0.0
    %666 = vmatpush1.msra.mxu0 0.0
    %667 = vmatprep.subr.mxu0 0.0
    %668 = vmatpush1.msra.mxu0 0.0
    %669 = vmatprep.subr.mxu0 0.0
    %670 = vmatpush1.msra.mxu0 0.0
    %671 = vmatprep.subr.mxu0 0.0
    %672 = vmatpush1.msra.mxu0 0.0
    %673 = vmatprep.subr.mxu0 0.0
    %674 = vmatpush1.msra.mxu0 0.0
    %675 = vmatprep.subr.mxu0 0.0
    %676 = vmatpush1.msra.mxu0 0.0
    %677 = vmatprep.subr.mxu0 0.0
    %678 = vmatpush1.msra.mxu0 0.0
    %679 = vmatprep.subr.mxu0 0.0
    %680 = vmatpush1.msra.mxu0 0.0
    %681 = vmatprep.subr.mxu0 0.0
    %682 = vmatpush1.msra.mxu0 0.0
    %683 = vmatprep.subr.mxu0 0.0
    %684 = vmatpush1.msra.mxu0 0.0
    %685 = vmatprep.subr.mxu0 0.0
    %686 = vmatpush1.msra.mxu0 0.0
    %687 = vmatprep.subr.mxu0 0.0
    %688 = vmatpush1.msra.mxu0 0.0
    %689 = vmatprep.subr.mxu0 0.0
    %690 = vmatpush1.msra.mxu0 0.0
    %691 = vmatprep.subr.mxu0 0.0
    %692 = vmatpush1.msra.mxu0 0.0
    %693 = vmatprep.subr.mxu0 0.0
    %694 = vmatpush1.msra.mxu0 0.0
    %695 = vmatprep.subr.mxu0 0.0
    %696 = vmatpush1.msra.mxu0 0.0
    %697 = vmatprep.subr.mxu0 0.0
    %698 = vmatpush1.msra.mxu0 0.0
    %699 = vmatprep.subr.mxu0 0.0
    %700 = vmatpush1.msra.mxu0 0.0
    %701 = vmatprep.subr.mxu0 0.0
    %702 = vmatpush1.msra.mxu0 0.0
    %703 = vmatprep.subr.mxu0 0.0
    %704 = vmatpush1.msra.mxu0 0.0
    %705 = vmatprep.subr.mxu0 0.0
    %706 = vmatpush1.msra.mxu0 0.0
    %707 = vmatprep.subr.mxu0 0.0
    %708 = vmatpush1.msra.mxu0 0.0
    %709 = vmatprep.subr.mxu0 0.0
    %710 = vmatpush1.msra.mxu0 0.0
    %711 = vmatprep.subr.mxu0 0.0
    %712 = vmatpush1.msra.mxu0 0.0
    %713 = vmatprep.mubr.f32.mxu0 0.0
    %714 = vmatmul.mubr.f32.gmra.mrb[0].mxu0 %v647
    %v715 = vpop.f32.mrb[0].mxu0
    %v716 = vadd.f32 %v643, %v715
    %v717 = vpop.f32.mrb[0].mxu0
    %718 = vdwg.mxu0
    %719 = vst [vmem:[#allocation10] sm:$0xf] %v716
    // Predicated region
    $region62: #{tpu_custom_call.1} parent=1 // pred_check
      _
    $region63: #{tpu_custom_call.1} parent=1 // pred_check_branch
      %721 = sbr.rel (0) target = $region65
    $region64: #{tpu_custom_call.1} parent=1 // pred_region
      %s723 = ssub.s32 64, 64
      %724 = vsyncadd [#allocation4], %s723
      %s726 = sshll.u32 [#allocation10], 4
      %s727 = int_to_ptr.vmem [resolvable:$true] %s726
      %729 = dma.vmem_to_hbm [thread:$0]  %s727, 64, %s11, [#allocation4]
    $region65: #{tpu_custom_call.1} parent=1 // pred_fallthru
      _
    // Predicated region
    $region66: #{tpu_custom_call.1} parent=1 // pred_check
      _
    $region67: #{tpu_custom_call.1} parent=1 // pred_check_branch
      %731 = sbr.rel (0) target = $region69
    $region68: #{tpu_custom_call.1} parent=1 // pred_region
      %732 = dma.done [#allocation4], 64
    $region69: #{tpu_custom_call.1} parent=1 // pred_fallthru
      _
    %733 = vsyncpa [#allocation3], 1
    %734 = vsyncpa [#allocation6], 1
    %735 = vsyncpa [#allocation9], 1
    %736 = vsyncpa [#allocation4], 1

</llo_original>
